<compile_context>
chip_gen: v5e
topology: v5e:2x2
jax: 0.10.0
libtpu: 0.0.40
codegen_flags: <defaults>
</compile_context>

<pallas_src>
import functools
import math

import jax
import jax.numpy as jnp
from jax import lax
from jax.experimental import pallas as pl
from jax.experimental.pallas import tpu as pltpu

_LANES = 128
_NUM_SUMS = 8
# output rows: 0 rot L1, 1 pos L1, 2 velocity, 3 kinetic, 4 acceleration,
#              5 root L1, 6 root velocity, 7 unused


@functools.lru_cache(maxsize=None)
def _vmem_limit_bytes():
    """Per-generation scoped-VMEM budget: ~48 MiB on v7x (64 MiB physical),
    ~96 MiB on v5e/v6e (128 MiB physical)."""
    cap = 64 * 1024 * 1024
    try:
        cap = int(pltpu.get_tpu_info().vmem_capacity_bytes)
    except Exception:  # pragma: no cover - older jax / unusual backends
        pass
    return int(min(cap * 3 // 4, 96 * 1024 * 1024))


def _choose_b_blk(b, t, f_rot, f_pos, f_root, itemsize, vmem_limit):
    """Largest divisor of B whose per-step working set (double-buffered
    inputs + generous f32 temporaries) fits ~60% of the VMEM budget.
    Divisor (not ceil-div) so no grid step ever reads a padded partial
    batch block."""
    in_bytes = 2 * t * (f_rot + f_pos + f_root) * itemsize        # gt + pred
    tmp_bytes = 4 * t * (2 * f_rot + 8 * f_pos + 4 * f_root)      # f32 temps
    per_row = 2 * in_bytes + tmp_bytes                            # x2 pipeline bufs
    budget = int(vmem_limit * 0.6)
    b_max = max(1, budget // max(1, per_row))
    if b_max >= b:
        return b
    for cand in range(b_max, 0, -1):
        if b % cand == 0:
            return cand
    return 1


def _fused_kernel(gt_rot_ref, pr_rot_ref, gt_pos_ref, pr_pos_ref,
                  gt_root_ref, pr_root_ref, out_ref):
    """One batch block of all three streams -> (8, 128) lane-dense partial sums."""
    row = lax.broadcasted_iota(jnp.int32, (_NUM_SUMS, _LANES), 0)

    # --- rotation stream: plain L1 sum ------------------------------------
    d_rot = (gt_rot_ref[...].astype(jnp.float32)
             - pr_rot_ref[...].astype(jnp.float32))
    out = jnp.where(row == 0, jnp.sum(jnp.abs(d_rot)), 0.0)

    # --- position stream: L1 / velocity / kinetic / acceleration ----------
    gt_pos = gt_pos_ref[...].astype(jnp.float32)
    pr_pos = pr_pos_ref[...].astype(jnp.float32)
    d = gt_pos - pr_pos                      # diff(gt) - diff(pred) == diff(d)
    s = gt_pos + pr_pos
    out = out + jnp.where(row == 1, jnp.sum(jnp.abs(d)), 0.0)
    dd = d[:, 1:, :] - d[:, :-1, :]          # sublane-offset temporal diff
    ds = s[:, 1:, :] - s[:, :-1, :]
    out = out + jnp.where(row == 2, jnp.sum(jnp.abs(dd)), 0.0)
    out = out + jnp.where(row == 3, jnp.sum(jnp.abs(dd * ds)), 0.0)
    ddd = dd[:, 1:, :] - dd[:, :-1, :]
    out = out + jnp.where(row == 4, jnp.sum(jnp.abs(ddd)), 0.0)

    # --- root stream: L1 / velocity ---------------------------------------
    d_root = (gt_root_ref[...].astype(jnp.float32)
              - pr_root_ref[...].astype(jnp.float32))
    out = out + jnp.where(row == 5, jnp.sum(jnp.abs(d_root)), 0.0)
    dd_root = d_root[:, 1:, :] - d_root[:, :-1, :]
    out = out + jnp.where(row == 6, jnp.sum(jnp.abs(dd_root)), 0.0)

    out_ref[0] = out


def _fused_sums(gt_rot, pr_rot, gt_pos, pr_pos, gt_root, pr_root):
    """Single pallas_call over batch blocks; returns the 8 total sums."""
    b, t = gt_pos.shape[0], gt_pos.shape[1]
    f_rot = math.prod(gt_rot.shape[2:])
    f_pos = math.prod(gt_pos.shape[2:])
    f_root = math.prod(gt_root.shape[2:])

    # TODO(synk): like the PyTorch reference, T < 3 is degenerate (zero-size
    # diffs / nan means); reject it instead of emitting zero-size slices.
    if t < 3:
        raise ValueError("GeometricKinetic requires T >= 3 time steps")

    # Free, contiguous reshapes -- no HBM repack pass.
    gt_rot = gt_rot.reshape(b, t, f_rot)
    pr_rot = pr_rot.reshape(b, t, f_rot)
    gt_pos = gt_pos.reshape(b, t, f_pos)
    pr_pos = pr_pos.reshape(b, t, f_pos)
    gt_root = gt_root.reshape(b, t, f_root)
    pr_root = pr_root.reshape(b, t, f_root)

    vmem_limit = _vmem_limit_bytes()
    b_blk = _choose_b_blk(b, t, f_rot, f_pos, f_root,
                          gt_pos.dtype.itemsize, vmem_limit)
    nb = b // b_blk

    in_bytes = 2 * b * t * (f_rot + f_pos + f_root) * gt_pos.dtype.itemsize
    cost = pl.CostEstimate(
        flops=b * t * (4 * f_rot + 16 * f_pos + 8 * f_root),
        transcendentals=0,
        bytes_accessed=in_bytes + nb * _NUM_SUMS * _LANES * 4)

    def spec(f):
        return pl.BlockSpec((b_blk, t, f), lambda i: (i, 0, 0))

    out = pl.pallas_call(
        _fused_kernel,
        grid=(nb,),
        in_specs=[spec(f_rot), spec(f_rot),
                  spec(f_pos), spec(f_pos),
                  spec(f_root), spec(f_root)],
        out_specs=pl.BlockSpec((1, _NUM_SUMS, _LANES), lambda i: (i, 0, 0)),
        out_shape=jax.ShapeDtypeStruct((nb, _NUM_SUMS, _LANES), jnp.float32),
        compiler_params=pltpu.CompilerParams(
            # Independent batch blocks: "parallel" lets v7x shard the grid
            # across its two TensorCores (near-neutral on single-TC v5e/v6e).
            dimension_semantics=("parallel",),
            vmem_limit_bytes=vmem_limit),
        cost_estimate=cost,
    )(gt_rot, pr_rot, gt_pos, pr_pos, gt_root, pr_root)

    # Tiny final reduction over per-block partial sums, kept outside the
    # kernel so independent output blocks can shard across cores on v7x.
    return jnp.sum(out[:, :, 0], axis=0)           # (8,)


@functools.partial(jax.jit, static_argnames=(
    "rotation", "position", "velocity", "acceleration",
    "rotation_weight", "position_weight", "velocity_weight",
    "acceleration_weight", "kinetic_weight"))
def geometric_kinetic(gt_rot, pred_rot, gt_pos, pred_pos, gt_root, pred_root,
                      rotation=True, position=True, velocity=True,
                      acceleration=True, rotation_weight=1.0,
                      position_weight=1.0, velocity_weight=1.0,
                      acceleration_weight=1.0, kinetic_weight=1.0):
    """Mirrors GeometricKinetic.forward (same 9-tuple of scalar losses)."""
    b, t = gt_pos.shape[0], gt_pos.shape[1]
    f_rot = math.prod(gt_rot.shape[2:])
    f_pos = math.prod(gt_pos.shape[2:])
    f_root = math.prod(gt_root.shape[2:])

    sums = _fused_sums(gt_rot, pred_rot, gt_pos, pred_pos, gt_root, pred_root)

    # L1Loss uses mean reduction; divide the kernel sums by the element counts.
    rotation_loss = sums[0] / (b * t * f_rot)
    position_loss = sums[1] / (b * t * f_pos)
    velocity_loss = sums[2] / (b * (t - 1) * f_pos)
    kinetic_loss = sums[3] / (b * (t - 1) * f_pos)
    acceleration_loss = sums[4] / (b * (t - 2) * f_pos)
    root_pos_loss = sums[5] / (b * t * f_root)
    root_velocity_loss = sums[6] / (b * (t - 1) * f_root)

    total_loss = jnp.float32(0.0)
    unweighted_loss = jnp.float32(0.0)
    if rotation:
        unweighted_loss = unweighted_loss + rotation_loss
        total_loss = total_loss + rotation_weight * rotation_loss
    if position:
        unweighted_loss = unweighted_loss + position_loss
        total_loss = total_loss + position_weight * position_loss
        total_loss = total_loss + position_weight * 1 * root_pos_loss
    if velocity:
        unweighted_loss = unweighted_loss + velocity_loss
        total_loss = total_loss + velocity_weight * velocity_loss
        total_loss = total_loss + velocity_weight * 1 * root_velocity_loss
        total_loss = total_loss + kinetic_weight * kinetic_loss
    if acceleration:
        unweighted_loss = unweighted_loss + acceleration_loss
        total_loss = total_loss + acceleration_weight * acceleration_loss

    return (total_loss, rotation_loss, position_loss, velocity_loss,
            acceleration_loss, root_velocity_loss, root_pos_loss,
            kinetic_loss, unweighted_loss)


def _reference(gt_rot, pred_rot, gt_pos, pred_pos, gt_root, pred_root):
    """Pure-JAX reference mirroring the PyTorch forward (for verification)."""
    l1 = lambda a, b: jnp.mean(jnp.abs(a - b))
    gt_root_vel = jnp.diff(gt_root, axis=1)
    pred_root_vel = jnp.diff(pred_root, axis=1)
    gt_vel = jnp.diff(gt_pos, axis=1)
    pred_vel = jnp.diff(pred_pos, axis=1)
    gt_acc = jnp.diff(gt_vel, axis=1)
    pred_acc = jnp.diff(pred_vel, axis=1)
    rot_l = l1(gt_rot, pred_rot)
    pos_l = l1(gt_pos, pred_pos)
    root_l = l1(gt_root, pred_root)
    rvel_l = l1(gt_root_vel, pred_root_vel)
    vel_l = l1(gt_vel, pred_vel)
    kin_l = l1(gt_vel ** 2, pred_vel ** 2)
    acc_l = l1(gt_acc, pred_acc)
    total = rot_l + pos_l + root_l + vel_l + rvel_l + kin_l + acc_l
    unweighted = rot_l + pos_l + vel_l + acc_l
    return (total, rot_l, pos_l, vel_l, acc_l, rvel_l, root_l, kin_l, unweighted)


if __name__ == "__main__":
    key = jax.random.PRNGKey(0)
    ks = jax.random.split(key, 6)

    B, T, J = 2, 8, 4
    gt_rot = jax.random.normal(ks[0], (B, T, J, 4), dtype=jnp.float32)
    pred_rot = jax.random.normal(ks[1], (B, T, J, 4), dtype=jnp.float32)
    gt_pos = jax.random.normal(ks[2], (B, T, J, 3), dtype=jnp.float32)
    pred_pos = jax.random.normal(ks[3], (B, T, J, 3), dtype=jnp.float32)
    gt_root = jax.random.normal(ks[4], (B, T, 3), dtype=jnp.float32)
    pred_root = jax.random.normal(ks[5], (B, T, 3), dtype=jnp.float32)

    out = geometric_kinetic(gt_rot, pred_rot, gt_pos, pred_pos,
                            gt_root, pred_root)
    out = jax.block_until_ready(out)

    ref = _reference(gt_rot, pred_rot, gt_pos, pred_pos, gt_root, pred_root)
    for got, want in zip(out, ref):
        g, w = float(got), float(want)
        assert abs(g - w) <= 1e-4 + 1e-4 * abs(w), (g, w)

    print("KERNEL_OK")
</pallas_src>

<mosaic_0001>
module attributes {stable_mosaic.version = 11 : i64} {
  func.func @_fused_kernel(%arg0: i32, %arg1: memref<2x8x16xf32, #tpu.memory_space<vmem>>, %arg2: memref<2x8x16xf32, #tpu.memory_space<vmem>>, %arg3: memref<2x8x12xf32, #tpu.memory_space<vmem>>, %arg4: memref<2x8x12xf32, #tpu.memory_space<vmem>>, %arg5: memref<2x8x3xf32, #tpu.memory_space<vmem>>, %arg6: memref<2x8x3xf32, #tpu.memory_space<vmem>>, %arg7: memref<1x8x128xf32, #tpu.memory_space<vmem>>) attributes {dimension_semantics = [#tpu.dimension_semantics<parallel>], iteration_bounds = array<i64: 1>, scalar_prefetch = 0 : i64, scratch_operands = 0 : i64, tpu.core_type = #tpu.core_type<tc>, window_params = [{transform_indices = @transform_0, window_bounds = array<i64: 2, 8, 16>}, {transform_indices = @transform_1, window_bounds = array<i64: 2, 8, 16>}, {transform_indices = @transform_2, window_bounds = array<i64: 2, 8, 12>}, {transform_indices = @transform_3, window_bounds = array<i64: 2, 8, 12>}, {transform_indices = @transform_4, window_bounds = array<i64: 2, 8, 3>}, {transform_indices = @transform_5, window_bounds = array<i64: 2, 8, 3>}, {transform_indices = @transform_6, window_bounds = array<i64: 1, 8, 128>}]} {
    %0 = tpu.iota {dimensions = array<i32: 0>} : vector<8x128xi32>
    %c0 = arith.constant 0 : index
    %c0_0 = arith.constant 0 : index
    %c0_1 = arith.constant 0 : index
    %1 = vector.load %arg1[%c0, %c0_0, %c0_1] : memref<2x8x16xf32, #tpu.memory_space<vmem>>, vector<2x8x16xf32>
    %c0_2 = arith.constant 0 : index
    %c0_3 = arith.constant 0 : index
    %c0_4 = arith.constant 0 : index
    %2 = vector.load %arg2[%c0_2, %c0_3, %c0_4] : memref<2x8x16xf32, #tpu.memory_space<vmem>>, vector<2x8x16xf32>
    %3 = arith.subf %1, %2 : vector<2x8x16xf32>
    %c0_i32 = arith.constant 0 : i32
    %4 = vector.broadcast %c0_i32 : i32 to vector<8x128xi32>
    %5 = arith.cmpi eq, %0, %4 : vector<8x128xi32>
    %6 = math.absf %3 : vector<2x8x16xf32>
    %7 = vector.shape_cast %6 : vector<2x8x16xf32> to vector<1x2x8x16xf32>
    %cst = arith.constant dense<0.000000e+00> : vector<1xf32>
    %8 = vector.multi_reduction <add>, %7, %cst [1, 2, 3] : vector<1x2x8x16xf32> to vector<1xf32>
    %9 = vector.shape_cast %8 : vector<1xf32> to vector<1x1x1x1xf32>
    %10 = vector.extract %9[0, 0, 0, 0] : f32 from vector<1x1x1x1xf32>
    %cst_5 = arith.constant 0.000000e+00 : f32
    %11 = vector.broadcast %10 : f32 to vector<8x128xf32>
    %12 = vector.broadcast %cst_5 : f32 to vector<8x128xf32>
    %13 = arith.select %5, %11, %12 : vector<8x128xi1>, vector<8x128xf32>
    %c0_6 = arith.constant 0 : index
    %c0_7 = arith.constant 0 : index
    %c0_8 = arith.constant 0 : index
    %14 = vector.load %arg3[%c0_6, %c0_7, %c0_8] : memref<2x8x12xf32, #tpu.memory_space<vmem>>, vector<2x8x12xf32>
    %c0_9 = arith.constant 0 : index
    %c0_10 = arith.constant 0 : index
    %c0_11 = arith.constant 0 : index
    %15 = vector.load %arg4[%c0_9, %c0_10, %c0_11] : memref<2x8x12xf32, #tpu.memory_space<vmem>>, vector<2x8x12xf32>
    %16 = arith.subf %14, %15 : vector<2x8x12xf32>
    %17 = arith.addf %14, %15 : vector<2x8x12xf32>
    %c1_i32 = arith.constant 1 : i32
    %18 = vector.broadcast %c1_i32 : i32 to vector<8x128xi32>
    %19 = arith.cmpi eq, %0, %18 : vector<8x128xi32>
    %20 = math.absf %16 : vector<2x8x12xf32>
    %21 = vector.shape_cast %20 : vector<2x8x12xf32> to vector<1x2x8x12xf32>
    %cst_12 = arith.constant dense<0.000000e+00> : vector<1xf32>
    %22 = vector.multi_reduction <add>, %21, %cst_12 [1, 2, 3] : vector<1x2x8x12xf32> to vector<1xf32>
    %23 = vector.shape_cast %22 : vector<1xf32> to vector<1x1x1x1xf32>
    %24 = vector.extract %23[0, 0, 0, 0] : f32 from vector<1x1x1x1xf32>
    %cst_13 = arith.constant 0.000000e+00 : f32
    %25 = vector.broadcast %24 : f32 to vector<8x128xf32>
    %26 = vector.broadcast %cst_13 : f32 to vector<8x128xf32>
    %27 = arith.select %19, %25, %26 : vector<8x128xi1>, vector<8x128xf32>
    %28 = arith.addf %13, %27 : vector<8x128xf32>
    %29 = vector.extract_strided_slice %16 {offsets = [0, 1, 0], sizes = [2, 7, 12], strides = [1, 1, 1]} : vector<2x8x12xf32> to vector<2x7x12xf32>
    %30 = vector.extract_strided_slice %16 {offsets = [0, 0, 0], sizes = [2, 7, 12], strides = [1, 1, 1]} : vector<2x8x12xf32> to vector<2x7x12xf32>
    %31 = arith.subf %29, %30 : vector<2x7x12xf32>
    %32 = vector.extract_strided_slice %17 {offsets = [0, 1, 0], sizes = [2, 7, 12], strides = [1, 1, 1]} : vector<2x8x12xf32> to vector<2x7x12xf32>
    %33 = vector.extract_strided_slice %17 {offsets = [0, 0, 0], sizes = [2, 7, 12], strides = [1, 1, 1]} : vector<2x8x12xf32> to vector<2x7x12xf32>
    %34 = arith.subf %32, %33 : vector<2x7x12xf32>
    %c2_i32 = arith.constant 2 : i32
    %35 = vector.broadcast %c2_i32 : i32 to vector<8x128xi32>
    %36 = arith.cmpi eq, %0, %35 : vector<8x128xi32>
    %37 = math.absf %31 : vector<2x7x12xf32>
    %38 = vector.shape_cast %37 : vector<2x7x12xf32> to vector<1x2x7x12xf32>
    %cst_14 = arith.constant dense<0.000000e+00> : vector<1xf32>
    %39 = vector.multi_reduction <add>, %38, %cst_14 [1, 2, 3] : vector<1x2x7x12xf32> to vector<1xf32>
    %40 = vector.shape_cast %39 : vector<1xf32> to vector<1x1x1x1xf32>
    %41 = vector.extract %40[0, 0, 0, 0] : f32 from vector<1x1x1x1xf32>
    %cst_15 = arith.constant 0.000000e+00 : f32
    %42 = vector.broadcast %41 : f32 to vector<8x128xf32>
    %43 = vector.broadcast %cst_15 : f32 to vector<8x128xf32>
    %44 = arith.select %36, %42, %43 : vector<8x128xi1>, vector<8x128xf32>
    %45 = arith.addf %28, %44 : vector<8x128xf32>
    %c3_i32 = arith.constant 3 : i32
    %46 = vector.broadcast %c3_i32 : i32 to vector<8x128xi32>
    %47 = arith.cmpi eq, %0, %46 : vector<8x128xi32>
    %48 = arith.mulf %31, %34 : vector<2x7x12xf32>
    %49 = math.absf %48 : vector<2x7x12xf32>
    %50 = vector.shape_cast %49 : vector<2x7x12xf32> to vector<1x2x7x12xf32>
    %cst_16 = arith.constant dense<0.000000e+00> : vector<1xf32>
    %51 = vector.multi_reduction <add>, %50, %cst_16 [1, 2, 3] : vector<1x2x7x12xf32> to vector<1xf32>
    %52 = vector.shape_cast %51 : vector<1xf32> to vector<1x1x1x1xf32>
    %53 = vector.extract %52[0, 0, 0, 0] : f32 from vector<1x1x1x1xf32>
    %cst_17 = arith.constant 0.000000e+00 : f32
    %54 = vector.broadcast %53 : f32 to vector<8x128xf32>
    %55 = vector.broadcast %cst_17 : f32 to vector<8x128xf32>
    %56 = arith.select %47, %54, %55 : vector<8x128xi1>, vector<8x128xf32>
    %57 = arith.addf %45, %56 : vector<8x128xf32>
    %58 = vector.extract_strided_slice %31 {offsets = [0, 1, 0], sizes = [2, 6, 12], strides = [1, 1, 1]} : vector<2x7x12xf32> to vector<2x6x12xf32>
    %59 = vector.extract_strided_slice %31 {offsets = [0, 0, 0], sizes = [2, 6, 12], strides = [1, 1, 1]} : vector<2x7x12xf32> to vector<2x6x12xf32>
    %60 = arith.subf %58, %59 : vector<2x6x12xf32>
    %c4_i32 = arith.constant 4 : i32
    %61 = vector.broadcast %c4_i32 : i32 to vector<8x128xi32>
    %62 = arith.cmpi eq, %0, %61 : vector<8x128xi32>
    %63 = math.absf %60 : vector<2x6x12xf32>
    %64 = vector.shape_cast %63 : vector<2x6x12xf32> to vector<1x2x6x12xf32>
    %cst_18 = arith.constant dense<0.000000e+00> : vector<1xf32>
    %65 = vector.multi_reduction <add>, %64, %cst_18 [1, 2, 3] : vector<1x2x6x12xf32> to vector<1xf32>
    %66 = vector.shape_cast %65 : vector<1xf32> to vector<1x1x1x1xf32>
    %67 = vector.extract %66[0, 0, 0, 0] : f32 from vector<1x1x1x1xf32>
    %cst_19 = arith.constant 0.000000e+00 : f32
    %68 = vector.broadcast %67 : f32 to vector<8x128xf32>
    %69 = vector.broadcast %cst_19 : f32 to vector<8x128xf32>
    %70 = arith.select %62, %68, %69 : vector<8x128xi1>, vector<8x128xf32>
    %71 = arith.addf %57, %70 : vector<8x128xf32>
    %c0_20 = arith.constant 0 : index
    %c0_21 = arith.constant 0 : index
    %c0_22 = arith.constant 0 : index
    %72 = vector.load %arg5[%c0_20, %c0_21, %c0_22] : memref<2x8x3xf32, #tpu.memory_space<vmem>>, vector<2x8x3xf32>
    %c0_23 = arith.constant 0 : index
    %c0_24 = arith.constant 0 : index
    %c0_25 = arith.constant 0 : index
    %73 = vector.load %arg6[%c0_23, %c0_24, %c0_25] : memref<2x8x3xf32, #tpu.memory_space<vmem>>, vector<2x8x3xf32>
    %74 = arith.subf %72, %73 : vector<2x8x3xf32>
    %c5_i32 = arith.constant 5 : i32
    %75 = vector.broadcast %c5_i32 : i32 to vector<8x128xi32>
    %76 = arith.cmpi eq, %0, %75 : vector<8x128xi32>
    %77 = math.absf %74 : vector<2x8x3xf32>
    %78 = vector.shape_cast %77 : vector<2x8x3xf32> to vector<1x2x8x3xf32>
    %cst_26 = arith.constant dense<0.000000e+00> : vector<1xf32>
    %79 = vector.multi_reduction <add>, %78, %cst_26 [1, 2, 3] : vector<1x2x8x3xf32> to vector<1xf32>
    %80 = vector.shape_cast %79 : vector<1xf32> to vector<1x1x1x1xf32>
    %81 = vector.extract %80[0, 0, 0, 0] : f32 from vector<1x1x1x1xf32>
    %cst_27 = arith.constant 0.000000e+00 : f32
    %82 = vector.broadcast %81 : f32 to vector<8x128xf32>
    %83 = vector.broadcast %cst_27 : f32 to vector<8x128xf32>
    %84 = arith.select %76, %82, %83 : vector<8x128xi1>, vector<8x128xf32>
    %85 = arith.addf %71, %84 : vector<8x128xf32>
    %86 = vector.extract_strided_slice %74 {offsets = [0, 1, 0], sizes = [2, 7, 3], strides = [1, 1, 1]} : vector<2x8x3xf32> to vector<2x7x3xf32>
    %87 = vector.extract_strided_slice %74 {offsets = [0, 0, 0], sizes = [2, 7, 3], strides = [1, 1, 1]} : vector<2x8x3xf32> to vector<2x7x3xf32>
    %88 = arith.subf %86, %87 : vector<2x7x3xf32>
    %c6_i32 = arith.constant 6 : i32
    %89 = vector.broadcast %c6_i32 : i32 to vector<8x128xi32>
    %90 = arith.cmpi eq, %0, %89 : vector<8x128xi32>
    %91 = math.absf %88 : vector<2x7x3xf32>
    %92 = vector.shape_cast %91 : vector<2x7x3xf32> to vector<1x2x7x3xf32>
    %cst_28 = arith.constant dense<0.000000e+00> : vector<1xf32>
    %93 = vector.multi_reduction <add>, %92, %cst_28 [1, 2, 3] : vector<1x2x7x3xf32> to vector<1xf32>
    %94 = vector.shape_cast %93 : vector<1xf32> to vector<1x1x1x1xf32>
    %95 = vector.extract %94[0, 0, 0, 0] : f32 from vector<1x1x1x1xf32>
    %cst_29 = arith.constant 0.000000e+00 : f32
    %96 = vector.broadcast %95 : f32 to vector<8x128xf32>
    %97 = vector.broadcast %cst_29 : f32 to vector<8x128xf32>
    %98 = arith.select %90, %96, %97 : vector<8x128xi1>, vector<8x128xf32>
    %99 = arith.addf %85, %98 : vector<8x128xf32>
    %c0_30 = arith.constant 0 : index
    %c0_31 = arith.constant 0 : index
    %c0_32 = arith.constant 0 : index
    %100 = vector.load %arg7[%c0_30, %c0_31, %c0_32] : memref<1x8x128xf32, #tpu.memory_space<vmem>>, vector<1x8x128xf32>
    %101 = vector.shape_cast %100 : vector<1x8x128xf32> to vector<8x128xf32>
    %102 = vector.shape_cast %99 : vector<8x128xf32> to vector<1x8x128xf32>
    tpu.vector_store %arg7[%c0_30, %c0_31, %c0_32], %102 {strides = array<i32>} : memref<1x8x128xf32, #tpu.memory_space<vmem>>, vector<1x8x128xf32>,
    return
  }
  func.func @transform_0(%arg0: i32) -> (i32, i32, i32) {
    %c0_i32 = arith.constant 0 : i32
    %c0_i32_0 = arith.constant 0 : i32
    %c0_i32_1 = arith.constant 0 : i32
    return %arg0, %c0_i32, %c0_i32_0 : i32, i32, i32
  }
  func.func @transform_1(%arg0: i32) -> (i32, i32, i32) {
    %c0_i32 = arith.constant 0 : i32
    %c0_i32_0 = arith.constant 0 : i32
    %c0_i32_1 = arith.constant 0 : i32
    return %arg0, %c0_i32, %c0_i32_0 : i32, i32, i32
  }
  func.func @transform_2(%arg0: i32) -> (i32, i32, i32) {
    %c0_i32 = arith.constant 0 : i32
    %c0_i32_0 = arith.constant 0 : i32
    %c0_i32_1 = arith.constant 0 : i32
    return %arg0, %c0_i32, %c0_i32_0 : i32, i32, i32
  }
  func.func @transform_3(%arg0: i32) -> (i32, i32, i32) {
    %c0_i32 = arith.constant 0 : i32
    %c0_i32_0 = arith.constant 0 : i32
    %c0_i32_1 = arith.constant 0 : i32
    return %arg0, %c0_i32, %c0_i32_0 : i32, i32, i32
  }
  func.func @transform_4(%arg0: i32) -> (i32, i32, i32) {
    %c0_i32 = arith.constant 0 : i32
    %c0_i32_0 = arith.constant 0 : i32
    %c0_i32_1 = arith.constant 0 : i32
    return %arg0, %c0_i32, %c0_i32_0 : i32, i32, i32
  }
  func.func @transform_5(%arg0: i32) -> (i32, i32, i32) {
    %c0_i32 = arith.constant 0 : i32
    %c0_i32_0 = arith.constant 0 : i32
    %c0_i32_1 = arith.constant 0 : i32
    return %arg0, %c0_i32, %c0_i32_0 : i32, i32, i32
  }
  func.func @transform_6(%arg0: i32) -> (i32, i32, i32) {
    %c0_i32 = arith.constant 0 : i32
    %c0_i32_0 = arith.constant 0 : i32
    %c0_i32_1 = arith.constant 0 : i32
    return %arg0, %c0_i32, %c0_i32_0 : i32, i32, i32
  }
}

</mosaic_0001>

<llo_original>
// kernel: geometric_kinetic.1
$region0: #{geometric_kinetic.1}
  #allocation0 [shape = 'u32[]', space=smem, size = 0x4, offset = 0x4, fixed_abs, tag = 'smem constant byte address 0x4 - core index']
  #allocation1 [shape = 'u32[72,128]{1,0:T(1,128)}', space=vmem, size = 0x9000, scoped, tag = 'internal scratch']
  %s0 = inlined_call_operand.vmem [shape: f32[2,8,16], index: 0, kind: input, shape index: {}]
  %s1 = inlined_call_operand.vmem [shape: f32[2,8,16], index: 1, kind: input, shape index: {}]
  %s2 = inlined_call_operand.vmem [shape: f32[2,8,12], index: 2, kind: input, shape index: {}]
  %s3 = inlined_call_operand.vmem [shape: f32[2,8,12], index: 3, kind: input, shape index: {}]
  %s4 = inlined_call_operand.vmem [shape: f32[2,8,3], index: 4, kind: input, shape index: {}]
  %s5 = inlined_call_operand.vmem [shape: f32[2,8,3], index: 5, kind: input, shape index: {}]
  %s6 = inlined_call_operand.vmem [shape: f32[1,8,128], index: 6, kind: output, shape index: {}]
  %s7 = sld [smem:[#allocation0]]
  $region34: #{geometric_kinetic.1} parent=0
    _
  %s9 = ssub.s32 1, %s7
  %s10 = scalar_select 0, %s9, %s7
  // Predicated region
  $region2: #{geometric_kinetic.1} parent=0 // pred_check
    _
  $region3: #{geometric_kinetic.1} parent=0 // pred_check_branch
    %12 = sbr.rel (0) target = $region5
  $region4: #{geometric_kinetic.1} parent=0 // pred_region
    _
  $region5: #{geometric_kinetic.1} parent=0 // pred_fallthru
    _
  // Predicated region
  $region6: #{geometric_kinetic.1} parent=0 // pred_check
    _
  $region7: #{geometric_kinetic.1} parent=0 // pred_check_branch
    %14 = sbr.rel (0) target = $region9
  $region8: #{geometric_kinetic.1} parent=0 // pred_region
    _
  $region9: #{geometric_kinetic.1} parent=0 // pred_fallthru
    _
  // Predicated region
  $region10: #{geometric_kinetic.1} parent=0 // pred_check
    _
  $region11: #{geometric_kinetic.1} parent=0 // pred_check_branch
    %16 = sbr.rel (0) target = $region13
  $region12: #{geometric_kinetic.1} parent=0 // pred_region
    _
  $region13: #{geometric_kinetic.1} parent=0 // pred_fallthru
    _
  // Predicated region
  $region14: #{geometric_kinetic.1} parent=0 // pred_check
    _
  $region15: #{geometric_kinetic.1} parent=0 // pred_check_branch
    %18 = sbr.rel (0) target = $region17
  $region16: #{geometric_kinetic.1} parent=0 // pred_region
    _
  $region17: #{geometric_kinetic.1} parent=0 // pred_fallthru
    _
  // Predicated region
  $region18: #{geometric_kinetic.1} parent=0 // pred_check
    _
  $region19: #{geometric_kinetic.1} parent=0 // pred_check_branch
    %20 = sbr.rel (0) target = $region21
  $region20: #{geometric_kinetic.1} parent=0 // pred_region
    _
  $region21: #{geometric_kinetic.1} parent=0 // pred_fallthru
    _
  // Predicated region
  $region22: #{geometric_kinetic.1} parent=0 // pred_check
    _
  $region23: #{geometric_kinetic.1} parent=0 // pred_check_branch
    %22 = sbr.rel (0) target = $region25
  $region24: #{geometric_kinetic.1} parent=0 // pred_region
    _
  $region25: #{geometric_kinetic.1} parent=0 // pred_fallthru
    _
  %v23 = vlaneseq
  %v24 = vshrl.u32 %v23, 7
  %v25 = vld [vmem:[%s0] sm:$0xff]
  %v26 = vld [vmem:[%s0 + $0x8] sm:$0xff]
  %v27 = vld [vmem:[%s1] sm:$0xff]
  %v28 = vld [vmem:[%s1 + $0x8] sm:$0xff]
  %v29 = vsub.f32 %v25, %v27
  %v30 = vsub.f32 %v26, %v28
  %vm31 = vcmp.eq.s32.totalorder %v24, 0
  %v32 = vand.u32 2147483647, %v29
  %v33 = vand.u32 2147483647, %v30
  %vm34 = vcmask 130048
  %v35 = vsel %vm34, %v32, 0.0
  %v36 = vsel %vm34, %v33, 0.0
  %v37 = vadd.f32 %v35, %v36
  %38 = vadd.xlane.f32.xlu0 %v37
  %v39 = vpop.xlane.xlu0 %38
  %v40 = vrot.slane %v39, 4
  %v41 = vadd.f32 %v39, %v40
  %v42 = vrot.slane %v41, 2
  %v43 = vadd.f32 %v41, %v42
  %v44 = vrot.slane %v43, 1
  %v45 = vadd.f32 %v43, %v44
  %s46 = vtos %v45
  %v47 = vstv %s46
  %v48 = vsel %vm31, %v47, 0.0
  %v49 = vld [vmem:[%s2] sm:$0xff]
  %v50 = vld [vmem:[%s2 + $0x8] sm:$0xff]
  %v51 = vld [vmem:[%s3] sm:$0xff]
  %v52 = vld [vmem:[%s3 + $0x8] sm:$0xff]
  %v53 = vsub.f32 %v49, %v51
  %v54 = vsub.f32 %v50, %v52
  %v55 = vadd.f32 %v49, %v51
  %v56 = vadd.f32 %v50, %v52
  %vm57 = vcmp.eq.s32.totalorder %v24, 1
  %v58 = vand.u32 2147483647, %v53
  %v59 = vand.u32 2147483647, %v54
  %vm60 = vcmask 97280
  %v61 = vsel %vm60, %v58, 0.0
  %v62 = vsel %vm60, %v59, 0.0
  %v63 = vadd.f32 %v61, %v62
  %64 = vadd.xlane.f32.xlu0 %v63
  %v65 = vpop.xlane.xlu0 %64
  %v66 = vrot.slane %v65, 4
  %v67 = vadd.f32 %v65, %v66
  %v68 = vrot.slane %v67, 2
  %v69 = vadd.f32 %v67, %v68
  %v70 = vrot.slane %v69, 1
  %v71 = vadd.f32 %v69, %v70
  %s72 = vtos %v71
  %v73 = vstv %s72
  %v74 = vsel %vm57, %v73, 0.0
  %v75 = vadd.f32 %v48, %v74
  %v78 = vrot.slane %v53, 7
  %v79 = vrot.slane %v54, 7
  %v82 = vsub.f32 %v53, %v78
  %v83 = vsub.f32 %v54, %v79
  %v86 = vrot.slane %v55, 7
  %v87 = vrot.slane %v56, 7
  %v90 = vsub.f32 %v55, %v86
  %v91 = vsub.f32 %v56, %v87
  %vm92 = vcmp.eq.s32.totalorder %v24, 2
  %v93 = vand.u32 2147483647, %v82
  %v94 = vand.u32 2147483647, %v83
  %v97 = vrot.slane %v93, 1
  %v98 = vrot.slane %v94, 1
  %vm101 = vcmask 96256
  %v102 = vsel %vm101, %v97, 0.0
  %v103 = vsel %vm101, %v98, 0.0
  %v104 = vadd.f32 %v102, %v103
  %105 = vadd.xlane.f32.xlu0 %v104
  %v106 = vpop.xlane.xlu0 %105
  %v107 = vrot.slane %v106, 4
  %v108 = vadd.f32 %v106, %v107
  %v109 = vrot.slane %v108, 2
  %v110 = vadd.f32 %v108, %v109
  %v111 = vrot.slane %v110, 1
  %v112 = vadd.f32 %v110, %v111
  %s113 = vtos %v112
  %v114 = vstv %s113
  %v115 = vsel %vm92, %v114, 0.0
  %v116 = vadd.f32 %v75, %v115
  %vm117 = vcmp.eq.s32.totalorder %v24, 3
  %v118 = vmul.f32 %v82, %v90
  %v119 = vmul.f32 %v83, %v91
  %v120 = vand.u32 2147483647, %v118
  %v121 = vand.u32 2147483647, %v119
  %v124 = vrot.slane %v120, 1
  %v125 = vrot.slane %v121, 1
  %v128 = vsel %vm101, %v124, 0.0
  %v129 = vsel %vm101, %v125, 0.0
  %v130 = vadd.f32 %v128, %v129
  %131 = vadd.xlane.f32.xlu0 %v130
  %v132 = vpop.xlane.xlu0 %131
  %v133 = vrot.slane %v132, 4
  %v134 = vadd.f32 %v132, %v133
  %v135 = vrot.slane %v134, 2
  %v136 = vadd.f32 %v134, %v135
  %v137 = vrot.slane %v136, 1
  %v138 = vadd.f32 %v136, %v137
  %s139 = vtos %v138
  %v140 = vstv %s139
  %v141 = vsel %vm117, %v140, 0.0
  %v142 = vadd.f32 %v116, %v141
  %v145 = vrot.slane %v82, 7
  %v146 = vrot.slane %v83, 7
  %v149 = vsub.f32 %v82, %v145
  %v150 = vsub.f32 %v83, %v146
  %vm151 = vcmp.eq.s32.totalorder %v24, 4
  %v152 = vand.u32 2147483647, %v149
  %v153 = vand.u32 2147483647, %v150
  %v156 = vrot.slane %v152, 2
  %v157 = vrot.slane %v153, 2
  %vm160 = vcmask 95232
  %v161 = vsel %vm160, %v156, 0.0
  %v162 = vsel %vm160, %v157, 0.0
  %v163 = vadd.f32 %v161, %v162
  %164 = vadd.xlane.f32.xlu0 %v163
  %v165 = vpop.xlane.xlu0 %164
  %v166 = vrot.slane %v165, 4
  %v167 = vadd.f32 %v165, %v166
  %v168 = vrot.slane %v167, 2
  %v169 = vadd.f32 %v167, %v168
  %v170 = vrot.slane %v169, 1
  %v171 = vadd.f32 %v169, %v170
  %s172 = vtos %v171
  %v173 = vstv %s172
  %v174 = vsel %vm151, %v173, 0.0
  %v175 = vadd.f32 %v142, %v174
  %v176 = vld [vmem:[%s4] sm:$0xff]
  %v177 = vld [vmem:[%s4 + $0x8] sm:$0xff]
  %v178 = vld [vmem:[%s5] sm:$0xff]
  %v179 = vld [vmem:[%s5 + $0x8] sm:$0xff]
  %v180 = vsub.f32 %v176, %v178
  %v181 = vsub.f32 %v177, %v179
  %vm182 = vcmp.eq.s32.totalorder %v24, 5
  %v183 = vand.u32 2147483647, %v180
  %v184 = vand.u32 2147483647, %v181
  %vm185 = vcmask 23552
  %v186 = vsel %vm185, %v183, 0.0
  %v187 = vsel %vm185, %v184, 0.0
  %v188 = vadd.f32 %v186, %v187
  %189 = vadd.xlane.f32.xlu0 %v188
  %v190 = vpop.xlane.xlu0 %189
  %v191 = vrot.slane %v190, 4
  %v192 = vadd.f32 %v190, %v191
  %v193 = vrot.slane %v192, 2
  %v194 = vadd.f32 %v192, %v193
  %v195 = vrot.slane %v194, 1
  %v196 = vadd.f32 %v194, %v195
  %s197 = vtos %v196
  %v198 = vstv %s197
  %v199 = vsel %vm182, %v198, 0.0
  %v200 = vadd.f32 %v175, %v199
  %v203 = vrot.slane %v180, 7
  %v204 = vrot.slane %v181, 7
  %v207 = vsub.f32 %v180, %v203
  %v208 = vsub.f32 %v181, %v204
  %vm209 = vcmp.eq.s32.totalorder %v24, 6
  %v210 = vand.u32 2147483647, %v207
  %v211 = vand.u32 2147483647, %v208
  %v214 = vrot.slane %v210, 1
  %v215 = vrot.slane %v211, 1
  %vm218 = vcmask 22528
  %v219 = vsel %vm218, %v214, 0.0
  %v220 = vsel %vm218, %v215, 0.0
  %v221 = vadd.f32 %v219, %v220
  %222 = vadd.xlane.f32.xlu0 %v221
  %v223 = vpop.xlane.xlu0 %222
  %v224 = vrot.slane %v223, 4
  %v225 = vadd.f32 %v223, %v224
  %v226 = vrot.slane %v225, 2
  %v227 = vadd.f32 %v225, %v226
  %v228 = vrot.slane %v227, 1
  %v229 = vadd.f32 %v227, %v228
  %s230 = vtos %v229
  %v231 = vstv %s230
  %v232 = vsel %vm209, %v231, 0.0
  %v233 = vadd.f32 %v200, %v232
  %234 = vst [vmem:[%s6] sm:$0xff] %v233
  // Predicated region
  $region26: #{geometric_kinetic.1} parent=0 // pred_check
    _
  $region27: #{geometric_kinetic.1} parent=0 // pred_check_branch
    %236 = sbr.rel (0) target = $region29
  $region28: #{geometric_kinetic.1} parent=0 // pred_region
    _
  $region29: #{geometric_kinetic.1} parent=0 // pred_fallthru
    _
  // Predicated region
  $region30: #{geometric_kinetic.1} parent=0 // pred_check
    _
  $region31: #{geometric_kinetic.1} parent=0 // pred_check_branch
    %238 = sbr.rel (0) target = $region33
  $region32: #{geometric_kinetic.1} parent=0 // pred_region
    _
  $region33: #{geometric_kinetic.1} parent=0 // pred_fallthru
    _

</llo_original>
